<compile_context>
chip_gen: v6e
topology: v6e:2x2x1
jax: 0.10.0
libtpu: 0.0.40
codegen_flags: <defaults>
</compile_context>

<pallas_src>
import functools

import jax
import jax.numpy as jnp
from jax.experimental import pallas as pl
from jax.experimental.pallas import tpu as pltpu


def _pick_tiling(hw, nc, *, max_tile_cols=32768, vmem_input_budget=24 << 20):
    """Choose (tile, num_tiles, padded_hw): tile is a multiple of 128 sized so
    the two double-buffered input streams stay inside the VMEM budget."""
    nc_pad = ((nc + 7) // 8) * 8
    cols_budget = vmem_input_budget // (2 * 2 * nc_pad * 4)   # 2 inputs x 2 bufs x f32
    cols = max(128, min(max_tile_cols, (cols_budget // 128) * 128))
    num_tiles = max(1, -(-hw // cols))                        # cdiv
    tile = -(-hw // (num_tiles * 128)) * 128                  # mult of 128, <= cols
    padded_hw = num_tiles * tile
    return tile, num_tiles, padded_hw


def _dicefocal_partial_kernel(x_ref, t_ref, out_ref, acc_ref, *,
                              hw, tile, tiles_per_split, n_chunks, needs_mask):
    sp = pl.program_id(0)   # parallel HW split
    j = pl.program_id(1)    # streamed HW tile within the split

    @pl.when(j == 0)
    def _init():
        acc_ref[...] = jnp.zeros_like(acc_ref)

    x = x_ref[...].astype(jnp.float32)      # (NC, tile)
    t = t_ref[...].astype(jnp.float32)      # (NC, tile)

    # Stable logits-form sigmoid / log-sigmoid: 2 exp + 1 log, no divide.
    # (Matches F.binary_cross_entropy's -100 clamp; for |x| in ~[17, 100) this
    # is slightly more accurate than the saturating f32 sigmoid-then-log.)
    e = jnp.exp(-jnp.abs(x))
    l = jnp.log(1.0 + e)
    pos = x >= 0.0
    log_p_raw = jnp.where(pos, -l, x - l)        # log(sigmoid(x))
    log_1mp_raw = jnp.where(pos, -x - l, -l)     # log(1 - sigmoid(x))
    p = jnp.exp(log_p_raw)                       # sigmoid(x), divide-free
    log_p = jnp.maximum(log_p_raw, -100.0)
    log_1mp = jnp.maximum(log_1mp_raw, -100.0)
    bce = -(log_1mp + t * (log_p - log_1mp))

    if needs_mask:
        # Only emitted when HW was padded up to a tile multiple: zero out the
        # contributions of the padded columns.
        g_tile = sp * tiles_per_split + j
        col = g_tile * tile + jax.lax.broadcasted_iota(jnp.int32, x.shape, 1)
        valid = col < hw
        p = jnp.where(valid, p, 0.0)
        t = jnp.where(valid, t, 0.0)
        bce = jnp.where(valid, bce, 0.0)

    def lane_fold(v):
        # Fold the tile's 128-wide lane chunks with pure elementwise (VPU)
        # adds; the single cross-lane reduce is deferred to the finalize.
        acc = v[:, 0:128]
        for k in range(1, n_chunks):
            acc = acc + v[:, k * 128:(k + 1) * 128]
        return acc

    acc_ref[0] += lane_fold(p * t)    # intersection
    acc_ref[1] += lane_fold(p)        # sum(p)
    acc_ref[2] += lane_fold(t)        # sum(t)
    acc_ref[3] += lane_fold(bce)      # sum(bce)

    @pl.when(j == pl.num_programs(1) - 1)
    def _finalize():
        # Single stacked (4, NC) store; one cross-lane reduce per split.
        out_ref[...] = jnp.sum(acc_ref[...], axis=-1)


def dice_focal_loss(output, target, weight, *,
                    smooth=1.0, alpha=0.8, gamma=2.0,
                    max_tile_cols=32768, vmem_input_budget=24 << 20):
    n, c, h, w_sp = output.shape
    hw = h * w_sp
    nc = n * c

    # Free views: contiguous NCHW -> (N*C, H*W). No transpose, no dtype cast
    # in the wrapper (upcast happens per-tile in VMEM).
    x = output.reshape(nc, hw)
    t = target.reshape(nc, hw)

    tile, num_tiles, padded_hw = _pick_tiling(
        hw, nc, max_tile_cols=max_tile_cols, vmem_input_budget=vmem_input_budget)

    needs_mask = padded_hw != hw
    if needs_mask:
        pad = padded_hw - hw
        x = jnp.pad(x, ((0, 0), (0, pad)))
        t = jnp.pad(t, ((0, 0), (0, pad)))

    # Parallel split of the HW axis (gives the v7x megacore >=2 parallel
    # blocks; measured ~0% cost on single-TC v5e/v6e).
    n_split = 2 if (num_tiles >= 2 and num_tiles % 2 == 0) else 1
    tiles_per_split = num_tiles // n_split

    kernel = functools.partial(
        _dicefocal_partial_kernel, hw=hw, tile=tile,
        tiles_per_split=tiles_per_split, n_chunks=tile // 128,
        needs_mask=needs_mask)

    partials = pl.pallas_call(
        kernel,
        out_shape=jax.ShapeDtypeStruct((n_split, 4, nc), jnp.float32),
        grid_spec=pltpu.PrefetchScalarGridSpec(
            num_scalar_prefetch=0,
            grid=(n_split, tiles_per_split),
            in_specs=[
                pl.BlockSpec((nc, tile),
                             lambda s, j: (0, s * tiles_per_split + j)),
                pl.BlockSpec((nc, tile),
                             lambda s, j: (0, s * tiles_per_split + j)),
            ],
            out_specs=pl.BlockSpec((None, 4, nc), lambda s, j: (s, 0, 0)),
            scratch_shapes=[pltpu.VMEM((4, nc, 128), jnp.float32)],
        ),
        compiler_params=pltpu.CompilerParams(
            dimension_semantics=("parallel", "arbitrary"),
            vmem_limit_bytes=40 * 1024 * 1024),
    )(x, t)

    # Tiny finalize (4 x C values) in plain JAX.
    sums = jnp.sum(partials, axis=0).reshape(4, n, c).sum(axis=1)   # (4, C)
    inter, psum, tsum, bce_c = sums[0], sums[1], sums[2], sums[3]
    w = weight.astype(jnp.float32)

    dice = 1.0 - (2.0 * inter + smooth) / (psum + tsum + smooth)
    dice_loss = jnp.mean(dice * w)

    focal = alpha * (1.0 - jnp.exp(-bce_c)) ** gamma * bce_c
    focal_loss = jnp.mean(focal * w)

    return dice_loss + focal_loss


def _reference_dice_focal(output, target, weight, smooth=1.0, alpha=0.8, gamma=2.0):
    p = jax.nn.sigmoid(output.astype(jnp.float32))
    t = target.astype(jnp.float32)

    inter = jnp.sum(p * t, axis=(0, 2, 3))
    psum = jnp.sum(p, axis=(0, 2, 3))
    tsum = jnp.sum(t, axis=(0, 2, 3))
    dice = 1.0 - (2.0 * inter + smooth) / (psum + tsum + smooth)
    dice_loss = jnp.mean(dice * weight)

    log_p = jnp.maximum(jnp.log(p), -100.0)
    log_1mp = jnp.maximum(jnp.log(1.0 - p), -100.0)
    bce = -(t * log_p + (1.0 - t) * log_1mp)
    bce_c = jnp.sum(bce, axis=(0, 2, 3))
    focal = alpha * (1.0 - jnp.exp(-bce_c)) ** gamma * bce_c
    focal_loss = jnp.mean(focal * weight)

    return dice_loss + focal_loss


if __name__ == "__main__":
    num_classes = 11
    weight = jnp.ones((num_classes,), dtype=jnp.float32)
    loss_fn = jax.jit(lambda o, t, w: dice_focal_loss(o, t, w))

    key = jax.random.PRNGKey(0)

    # Case 1: HW a multiple of 128 (fast path, no masking).
    N, C, H, W = 2, num_classes, 16, 16
    k1, k2, key = jax.random.split(key, 3)
    output = jax.random.normal(k1, (N, C, H, W), dtype=jnp.float32)
    target = jax.random.uniform(k2, (N, C, H, W), dtype=jnp.float32)  # soft labels
    loss = jax.block_until_ready(loss_fn(output, target, weight))
    ref = _reference_dice_focal(output, target, weight)
    assert jnp.allclose(loss, ref, rtol=1e-5, atol=1e-5), (loss, ref)

    # Case 2: HW not a multiple of 128 (exercises the padded / masked tail).
    N2, H2, W2 = 2, 10, 10
    k3, k4, key = jax.random.split(key, 3)
    output2 = jax.random.normal(k3, (N2, num_classes, H2, W2), dtype=jnp.float32)
    target2 = jax.random.uniform(k4, (N2, num_classes, H2, W2), dtype=jnp.float32)
    loss2 = jax.block_until_ready(loss_fn(output2, target2, weight))
    ref2 = _reference_dice_focal(output2, target2, weight)
    assert jnp.allclose(loss2, ref2, rtol=1e-5, atol=1e-5), (loss2, ref2)

    print("KERNEL_OK")
</pallas_src>

<mosaic_0001>
module attributes {stable_mosaic.version = 11 : i64} {
  func.func @_dicefocal_partial_kernel(%arg0: i32, %arg1: i32, %arg2: memref<22x256xf32, #tpu.memory_space<vmem>>, %arg3: memref<22x256xf32, #tpu.memory_space<vmem>>, %arg4: memref<1x4x22xf32, #tpu.memory_space<vmem>>, %arg5: memref<4x22x128xf32, #tpu.memory_space<vmem>>) attributes {dimension_semantics = [#tpu.dimension_semantics<parallel>, #tpu.dimension_semantics<arbitrary>], iteration_bounds = array<i64: 1, 1>, scalar_prefetch = 0 : i64, scratch_operands = 1 : i64, tpu.core_type = #tpu.core_type<tc>, window_params = [{transform_indices = @transform_0, window_bounds = array<i64: 22, 256>}, {transform_indices = @transform_1, window_bounds = array<i64: 22, 256>}, {transform_indices = @transform_2, window_bounds = array<i64: 1, 4, 22>}]} {
    %c0_i32 = arith.constant 0 : i32
    %0 = arith.cmpi eq, %arg1, %c0_i32 : i32
    %1 = arith.extui %0 : i1 to i32
    %c0_i32_0 = arith.constant 0 : i32
    %2 = arith.cmpi ne, %1, %c0_i32_0 : i32
    scf.if %2 {
      %cst_35 = arith.constant 0.000000e+00 : f32
      %74 = vector.broadcast %cst_35 : f32 to vector<4x22x128xf32>
      %c0_36 = arith.constant 0 : index
      %c0_37 = arith.constant 0 : index
      %c0_38 = arith.constant 0 : index
      %75 = vector.load %arg5[%c0_36, %c0_37, %c0_38] : memref<4x22x128xf32, #tpu.memory_space<vmem>>, vector<4x22x128xf32>
      tpu.vector_store %arg5[%c0_36, %c0_37, %c0_38], %74 {strides = array<i32>} : memref<4x22x128xf32, #tpu.memory_space<vmem>>, vector<4x22x128xf32>,
    } else {
    }
    %c0 = arith.constant 0 : index
    %c0_1 = arith.constant 0 : index
    %3 = vector.load %arg2[%c0, %c0_1] : memref<22x256xf32, #tpu.memory_space<vmem>>, vector<22x256xf32>
    %c0_2 = arith.constant 0 : index
    %c0_3 = arith.constant 0 : index
    %4 = vector.load %arg3[%c0_2, %c0_3] : memref<22x256xf32, #tpu.memory_space<vmem>>, vector<22x256xf32>
    %5 = math.absf %3 : vector<22x256xf32>
    %cst = arith.constant 0.000000e+00 : f32
    %6 = vector.broadcast %cst : f32 to vector<22x256xf32>
    %7 = arith.subf %6, %5 : vector<22x256xf32>
    %8 = math.exp %7 : vector<22x256xf32>
    %cst_4 = arith.constant 1.000000e+00 : f32
    %9 = vector.broadcast %cst_4 : f32 to vector<22x256xf32>
    %10 = arith.addf %9, %8 : vector<22x256xf32>
    %11 = math.log %10 : vector<22x256xf32>
    %cst_5 = arith.constant 0.000000e+00 : f32
    %12 = vector.broadcast %cst_5 : f32 to vector<22x256xf32>
    %13 = arith.cmpf oge, %3, %12 : vector<22x256xf32>
    %cst_6 = arith.constant 0.000000e+00 : f32
    %14 = vector.broadcast %cst_6 : f32 to vector<22x256xf32>
    %15 = arith.subf %14, %11 : vector<22x256xf32>
    %16 = arith.subf %3, %11 : vector<22x256xf32>
    %17 = arith.select %13, %15, %16 : vector<22x256xi1>, vector<22x256xf32>
    %cst_7 = arith.constant 0.000000e+00 : f32
    %18 = vector.broadcast %cst_7 : f32 to vector<22x256xf32>
    %19 = arith.subf %18, %3 : vector<22x256xf32>
    %20 = arith.subf %19, %11 : vector<22x256xf32>
    %cst_8 = arith.constant 0.000000e+00 : f32
    %21 = vector.broadcast %cst_8 : f32 to vector<22x256xf32>
    %22 = arith.subf %21, %11 : vector<22x256xf32>
    %23 = arith.select %13, %20, %22 : vector<22x256xi1>, vector<22x256xf32>
    %24 = math.exp %17 : vector<22x256xf32>
    %cst_9 = arith.constant -1.000000e+02 : f32
    %25 = vector.broadcast %cst_9 : f32 to vector<22x256xf32>
    %26 = arith.maximumf %17, %25 : vector<22x256xf32>
    %cst_10 = arith.constant -1.000000e+02 : f32
    %27 = vector.broadcast %cst_10 : f32 to vector<22x256xf32>
    %28 = arith.maximumf %23, %27 : vector<22x256xf32>
    %29 = arith.subf %26, %28 : vector<22x256xf32>
    %30 = arith.mulf %4, %29 : vector<22x256xf32>
    %31 = arith.addf %28, %30 : vector<22x256xf32>
    %cst_11 = arith.constant 0.000000e+00 : f32
    %32 = vector.broadcast %cst_11 : f32 to vector<22x256xf32>
    %33 = arith.subf %32, %31 : vector<22x256xf32>
    %c0_12 = arith.constant 0 : index
    %c0_13 = arith.constant 0 : index
    %c0_14 = arith.constant 0 : index
    %34 = vector.load %arg5[%c0_12, %c0_13, %c0_14] : memref<4x22x128xf32, #tpu.memory_space<vmem>>, vector<1x22x128xf32>
    %35 = vector.shape_cast %34 : vector<1x22x128xf32> to vector<22x128xf32>
    %36 = arith.mulf %24, %4 : vector<22x256xf32>
    %37 = vector.extract_strided_slice %36 {offsets = [0, 0], sizes = [22, 128], strides = [1, 1]} : vector<22x256xf32> to vector<22x128xf32>
    %38 = vector.extract_strided_slice %36 {offsets = [0, 128], sizes = [22, 128], strides = [1, 1]} : vector<22x256xf32> to vector<22x128xf32>
    %39 = arith.addf %37, %38 : vector<22x128xf32>
    %40 = arith.addf %35, %39 : vector<22x128xf32>
    %c0_15 = arith.constant 0 : index
    %c0_16 = arith.constant 0 : index
    %c0_17 = arith.constant 0 : index
    %41 = vector.load %arg5[%c0_15, %c0_16, %c0_17] : memref<4x22x128xf32, #tpu.memory_space<vmem>>, vector<1x22x128xf32>
    %42 = vector.shape_cast %41 : vector<1x22x128xf32> to vector<22x128xf32>
    %43 = vector.shape_cast %40 : vector<22x128xf32> to vector<1x22x128xf32>
    tpu.vector_store %arg5[%c0_15, %c0_16, %c0_17], %43 {strides = array<i32>} : memref<4x22x128xf32, #tpu.memory_space<vmem>>, vector<1x22x128xf32>,
    %c1 = arith.constant 1 : index
    %c0_18 = arith.constant 0 : index
    %c0_19 = arith.constant 0 : index
    %44 = vector.load %arg5[%c1, %c0_18, %c0_19] : memref<4x22x128xf32, #tpu.memory_space<vmem>>, vector<1x22x128xf32>
    %45 = vector.shape_cast %44 : vector<1x22x128xf32> to vector<22x128xf32>
    %46 = vector.extract_strided_slice %24 {offsets = [0, 0], sizes = [22, 128], strides = [1, 1]} : vector<22x256xf32> to vector<22x128xf32>
    %47 = vector.extract_strided_slice %24 {offsets = [0, 128], sizes = [22, 128], strides = [1, 1]} : vector<22x256xf32> to vector<22x128xf32>
    %48 = arith.addf %46, %47 : vector<22x128xf32>
    %49 = arith.addf %45, %48 : vector<22x128xf32>
    %c1_20 = arith.constant 1 : index
    %c0_21 = arith.constant 0 : index
    %c0_22 = arith.constant 0 : index
    %50 = vector.load %arg5[%c1_20, %c0_21, %c0_22] : memref<4x22x128xf32, #tpu.memory_space<vmem>>, vector<1x22x128xf32>
    %51 = vector.shape_cast %50 : vector<1x22x128xf32> to vector<22x128xf32>
    %52 = vector.shape_cast %49 : vector<22x128xf32> to vector<1x22x128xf32>
    tpu.vector_store %arg5[%c1_20, %c0_21, %c0_22], %52 {strides = array<i32>} : memref<4x22x128xf32, #tpu.memory_space<vmem>>, vector<1x22x128xf32>,
    %c2 = arith.constant 2 : index
    %c0_23 = arith.constant 0 : index
    %c0_24 = arith.constant 0 : index
    %53 = vector.load %arg5[%c2, %c0_23, %c0_24] : memref<4x22x128xf32, #tpu.memory_space<vmem>>, vector<1x22x128xf32>
    %54 = vector.shape_cast %53 : vector<1x22x128xf32> to vector<22x128xf32>
    %55 = vector.extract_strided_slice %4 {offsets = [0, 0], sizes = [22, 128], strides = [1, 1]} : vector<22x256xf32> to vector<22x128xf32>
    %56 = vector.extract_strided_slice %4 {offsets = [0, 128], sizes = [22, 128], strides = [1, 1]} : vector<22x256xf32> to vector<22x128xf32>
    %57 = arith.addf %55, %56 : vector<22x128xf32>
    %58 = arith.addf %54, %57 : vector<22x128xf32>
    %c2_25 = arith.constant 2 : index
    %c0_26 = arith.constant 0 : index
    %c0_27 = arith.constant 0 : index
    %59 = vector.load %arg5[%c2_25, %c0_26, %c0_27] : memref<4x22x128xf32, #tpu.memory_space<vmem>>, vector<1x22x128xf32>
    %60 = vector.shape_cast %59 : vector<1x22x128xf32> to vector<22x128xf32>
    %61 = vector.shape_cast %58 : vector<22x128xf32> to vector<1x22x128xf32>
    tpu.vector_store %arg5[%c2_25, %c0_26, %c0_27], %61 {strides = array<i32>} : memref<4x22x128xf32, #tpu.memory_space<vmem>>, vector<1x22x128xf32>,
    %c3 = arith.constant 3 : index
    %c0_28 = arith.constant 0 : index
    %c0_29 = arith.constant 0 : index
    %62 = vector.load %arg5[%c3, %c0_28, %c0_29] : memref<4x22x128xf32, #tpu.memory_space<vmem>>, vector<1x22x128xf32>
    %63 = vector.shape_cast %62 : vector<1x22x128xf32> to vector<22x128xf32>
    %64 = vector.extract_strided_slice %33 {offsets = [0, 0], sizes = [22, 128], strides = [1, 1]} : vector<22x256xf32> to vector<22x128xf32>
    %65 = vector.extract_strided_slice %33 {offsets = [0, 128], sizes = [22, 128], strides = [1, 1]} : vector<22x256xf32> to vector<22x128xf32>
    %66 = arith.addf %64, %65 : vector<22x128xf32>
    %67 = arith.addf %63, %66 : vector<22x128xf32>
    %c3_30 = arith.constant 3 : index
    %c0_31 = arith.constant 0 : index
    %c0_32 = arith.constant 0 : index
    %68 = vector.load %arg5[%c3_30, %c0_31, %c0_32] : memref<4x22x128xf32, #tpu.memory_space<vmem>>, vector<1x22x128xf32>
    %69 = vector.shape_cast %68 : vector<1x22x128xf32> to vector<22x128xf32>
    %70 = vector.shape_cast %67 : vector<22x128xf32> to vector<1x22x128xf32>
    tpu.vector_store %arg5[%c3_30, %c0_31, %c0_32], %70 {strides = array<i32>} : memref<4x22x128xf32, #tpu.memory_space<vmem>>, vector<1x22x128xf32>,
    %c0_i32_33 = arith.constant 0 : i32
    %71 = arith.cmpi eq, %arg1, %c0_i32_33 : i32
    %72 = arith.extui %71 : i1 to i32
    %c0_i32_34 = arith.constant 0 : i32
    %73 = arith.cmpi ne, %72, %c0_i32_34 : i32
    scf.if %73 {
      %c0_35 = arith.constant 0 : index
      %c0_36 = arith.constant 0 : index
      %c0_37 = arith.constant 0 : index
      %74 = vector.load %arg5[%c0_35, %c0_36, %c0_37] : memref<4x22x128xf32, #tpu.memory_space<vmem>>, vector<4x22x128xf32>
      %cst_38 = arith.constant dense<0.000000e+00> : vector<4x22xf32>
      %75 = vector.multi_reduction <add>, %74, %cst_38 [2] : vector<4x22x128xf32> to vector<4x22xf32>
      %c0_39 = arith.constant 0 : index
      %c0_40 = arith.constant 0 : index
      %c0_41 = arith.constant 0 : index
      %76 = vector.load %arg4[%c0_39, %c0_40, %c0_41] : memref<1x4x22xf32, #tpu.memory_space<vmem>>, vector<1x4x22xf32>
      %77 = vector.shape_cast %76 : vector<1x4x22xf32> to vector<4x22xf32>
      %78 = vector.shape_cast %75 : vector<4x22xf32> to vector<1x4x22xf32>
      tpu.vector_store %arg4[%c0_39, %c0_40, %c0_41], %78 {strides = array<i32>} : memref<1x4x22xf32, #tpu.memory_space<vmem>>, vector<1x4x22xf32>,
    } else {
    }
    return
  }
  func.func @transform_0(%arg0: i32, %arg1: i32) -> (i32, i32) {
    %c1_i32 = arith.constant 1 : i32
    %0 = arith.muli %arg0, %c1_i32 : i32
    %1 = arith.addi %0, %arg1 : i32
    %c0_i32 = arith.constant 0 : i32
    %c0_i32_0 = arith.constant 0 : i32
    return %c0_i32, %1 : i32, i32
  }
  func.func @transform_1(%arg0: i32, %arg1: i32) -> (i32, i32) {
    %c1_i32 = arith.constant 1 : i32
    %0 = arith.muli %arg0, %c1_i32 : i32
    %1 = arith.addi %0, %arg1 : i32
    %c0_i32 = arith.constant 0 : i32
    %c0_i32_0 = arith.constant 0 : i32
    return %c0_i32, %1 : i32, i32
  }
  func.func @transform_2(%arg0: i32, %arg1: i32) -> (i32, i32, i32) {
    %c0_i32 = arith.constant 0 : i32
    %c0_i32_0 = arith.constant 0 : i32
    %c0_i32_1 = arith.constant 0 : i32
    return %arg0, %c0_i32, %c0_i32_0 : i32, i32, i32
  }
}

</mosaic_0001>

<llo_original>
// kernel: _lambda_.1
$region0: #{_lambda_.1}
  #allocation0 [shape = 'u32[]', space=smem, size = 0x4, offset = 0x4, fixed_abs, tag = 'smem constant byte address 0x4 - core index']
  #allocation1 [shape = 'u32[144,128]{1,0:T(1,128)}', space=vmem, size = 0x12000, scoped, tag = 'internal scratch']
  #allocation2 [shape = 'f32[4,22,128]{2,1,0:T(8,128)}', space=vmem, size = 0xc000, scoped, tag = 'scratch operand']
  %s0 = inlined_call_operand.vmem [shape: f32[22,256], index: 0, kind: input, shape index: {}]
  %s1 = inlined_call_operand.vmem [shape: f32[22,256], index: 1, kind: input, shape index: {}]
  %s2 = inlined_call_operand.vmem [shape: f32[1,4,22], index: 2, kind: output, shape index: {}]
  %s3 = sld [smem:[#allocation0]]
  $region26: #{_lambda_.1} parent=0
    _
  %s5 = ssub.s32 1, %s3
  %s6 = scalar_select 0, %s5, %s3
  // Predicated region
  $region2: #{_lambda_.1} parent=0 // pred_check
    _
  $region3: #{_lambda_.1} parent=0 // pred_check_branch
    %8 = sbr.rel (0) target = $region5
  $region4: #{_lambda_.1} parent=0 // pred_region
    %s9 = sadd.s32 0, 0
    %s10 = smul.u32 2, %s9
    %p11 = scmp.lt.s32.totalorder %s10, 1
    %s12 = scalar_select %p11, %s10, 1
    %s13 = smul.addr %s12, 8
    %s14 = scalar_lea.vmem %s0, %s13
    %s15 = sadd.s32 0, 0
    %s16 = smul.u32 2, %s15
  $region5: #{_lambda_.1} parent=0 // pred_fallthru
    _
  // Predicated region
  $region6: #{_lambda_.1} parent=0 // pred_check
    _
  $region7: #{_lambda_.1} parent=0 // pred_check_branch
    %18 = sbr.rel (0) target = $region9
  $region8: #{_lambda_.1} parent=0 // pred_region
    %s19 = sadd.s32 0, 0
    %s20 = smul.u32 2, %s19
    %p21 = scmp.lt.s32.totalorder %s20, 1
    %s22 = scalar_select %p21, %s20, 1
    %s23 = smul.addr %s22, 8
    %s24 = scalar_lea.vmem %s1, %s23
    %s25 = sadd.s32 0, 0
    %s26 = smul.u32 2, %s25
  $region9: #{_lambda_.1} parent=0 // pred_fallthru
    _
  %s27 = sadd.s32 0, 0
  %s28 = smul.u32 2, %s27
  %p29 = scmp.lt.s32.totalorder %s28, 1
  %s30 = scalar_select %p29, %s28, 1
  %s31 = smul.addr %s30, 8
  %s32 = scalar_lea.vmem %s0, %s31
  %s33 = sadd.s32 0, 0
  %s34 = smul.u32 2, %s33
  %p35 = scmp.lt.s32.totalorder %s34, 1
  %s36 = scalar_select %p35, %s34, 1
  %s37 = smul.addr %s36, 8
  %s38 = scalar_lea.vmem %s1, %s37
  %s39 = sadd.s32 0, 0
  %s40 = smul.u32 2, %s39
  %p41 = scmp.lt.s32.totalorder %s40, 1
  %s42 = scalar_select %p41, %s40, 1
  %s43 = smul.addr %s42, 8
  %s44 = scalar_lea.vmem %s0, %s43
  %s45 = sadd.s32 0, 0
  %s46 = smul.u32 2, %s45
  %s47 = sadd.s32 0, 0
  %s48 = smul.u32 2, %s47
  %p49 = scmp.lt.s32.totalorder %s48, 1
  %s50 = scalar_select %p49, %s48, 1
  %s51 = smul.addr %s50, 8
  %s52 = scalar_lea.vmem %s1, %s51
  %s53 = sadd.s32 0, 0
  %s54 = smul.u32 2, %s53
  %p55 = scmp.eq.s32.totalorder 0, 0
  // Predicated region
  $region10: #{_lambda_.1} parent=0 // pred_check
    %p56 = pneg %p55
  $region11: #{_lambda_.1} parent=0 // pred_check_branch
    %58 = sbr.rel (%p56) target = $region13
  $region12: #{_lambda_.1} parent=0 // pred_region
    %59 = vst [vmem:[#allocation2] sm:$0xff] 0.0
    %60 = vst [vmem:[#allocation2 + $0x8] sm:$0xff] 0.0
    %61 = vst [vmem:[#allocation2 + $0x10] sm:$0x3f] 0.0
    %62 = vst [vmem:[#allocation2 + $0x18] sm:$0xff] 0.0
    %63 = vst [vmem:[#allocation2 + $0x20] sm:$0xff] 0.0
    %64 = vst [vmem:[#allocation2 + $0x28] sm:$0x3f] 0.0
    %65 = vst [vmem:[#allocation2 + $0x30] sm:$0xff] 0.0
    %66 = vst [vmem:[#allocation2 + $0x38] sm:$0xff] 0.0
    %67 = vst [vmem:[#allocation2 + $0x40] sm:$0x3f] 0.0
    %68 = vst [vmem:[#allocation2 + $0x48] sm:$0xff] 0.0
    %69 = vst [vmem:[#allocation2 + $0x50] sm:$0xff] 0.0
    %70 = vst [vmem:[#allocation2 + $0x58] sm:$0x3f] 0.0
  $region13: #{_lambda_.1} parent=0 // pred_fallthru
    _
  %v71 = vld [vmem:[%s44] sm:$0xff]
  %v72 = vld [vmem:[%s44 + $0x8] sm:$0xff]
  %v73 = vld [vmem:[%s44 + $0x10] sm:$0xff]
  %v74 = vld [vmem:[%s44 + $0x18] sm:$0xff]
  %v75 = vld [vmem:[%s44 + $0x20] sm:$0x3f]
  %v76 = vld [vmem:[%s44 + $0x28] sm:$0x3f]
  %v77 = vld [vmem:[%s52] sm:$0xff]
  %v78 = vld [vmem:[%s52 + $0x8] sm:$0xff]
  %v79 = vld [vmem:[%s52 + $0x10] sm:$0xff]
  %v80 = vld [vmem:[%s52 + $0x18] sm:$0xff]
  %v81 = vld [vmem:[%s52 + $0x20] sm:$0x3f]
  %v82 = vld [vmem:[%s52 + $0x28] sm:$0x3f]
  %v83 = vand.u32 2147483647, %v71
  %v84 = vand.u32 2147483647, %v72
  %v85 = vand.u32 2147483647, %v73
  %v86 = vand.u32 2147483647, %v74
  %v87 = vand.u32 2147483647, %v75
  %v88 = vand.u32 2147483647, %v76
  %v89 = vsub.f32 0.0, %v83
  %v90 = vsub.f32 0.0, %v84
  %v91 = vsub.f32 0.0, %v85
  %v92 = vsub.f32 0.0, %v86
  %v93 = vsub.f32 0.0, %v87
  %v94 = vsub.f32 0.0, %v88
  %v95 = vmul.f32 %v89, 1.442695
  %v96 = vpow.pop %v95
  %v97 = vmul.f32 %v90, 1.442695
  %v98 = vpow.pop %v97
  %v99 = vmul.f32 %v91, 1.442695
  %v100 = vpow.pop %v99
  %v101 = vmul.f32 %v92, 1.442695
  %v102 = vpow.pop %v101
  %v103 = vmul.f32 %v93, 1.442695
  %v104 = vpow.pop %v103
  %v105 = vmul.f32 %v94, 1.442695
  %v106 = vpow.pop %v105
  %v107 = vadd.f32 %v96, 1.0
  %v108 = vadd.f32 %v98, 1.0
  %v109 = vadd.f32 %v100, 1.0
  %v110 = vadd.f32 %v102, 1.0
  %v111 = vadd.f32 %v104, 1.0
  %v112 = vadd.f32 %v106, 1.0
  %v113 = vlog2.pop %v107
  %v114 = vmul.f32 %v113, 0.6931472
  %v115 = vlog2.pop %v108
  %v116 = vmul.f32 %v115, 0.6931472
  %v117 = vlog2.pop %v109
  %v118 = vmul.f32 %v117, 0.6931472
  %v119 = vlog2.pop %v110
  %v120 = vmul.f32 %v119, 0.6931472
  %v121 = vlog2.pop %v111
  %v122 = vmul.f32 %v121, 0.6931472
  %v123 = vlog2.pop %v112
  %v124 = vmul.f32 %v123, 0.6931472
  %vm125 = vcmp.ge.f32.partialorder %v71, 0.0
  %vm126 = vcmp.ge.f32.partialorder %v72, 0.0
  %vm127 = vcmp.ge.f32.partialorder %v73, 0.0
  %vm128 = vcmp.ge.f32.partialorder %v74, 0.0
  %vm129 = vcmp.ge.f32.partialorder %v75, 0.0
  %vm130 = vcmp.ge.f32.partialorder %v76, 0.0
  %v131 = vsub.f32 0.0, %v114
  %v132 = vsub.f32 0.0, %v116
  %v133 = vsub.f32 0.0, %v118
  %v134 = vsub.f32 0.0, %v120
  %v135 = vsub.f32 0.0, %v122
  %v136 = vsub.f32 0.0, %v124
  %v137 = vsub.f32 %v71, %v114
  %v138 = vsub.f32 %v72, %v116
  %v139 = vsub.f32 %v73, %v118
  %v140 = vsub.f32 %v74, %v120
  %v141 = vsub.f32 %v75, %v122
  %v142 = vsub.f32 %v76, %v124
  %v143 = vsel %vm125, %v131, %v137
  %v144 = vsel %vm126, %v132, %v138
  %v145 = vsel %vm127, %v133, %v139
  %v146 = vsel %vm128, %v134, %v140
  %v147 = vsel %vm129, %v135, %v141
  %v148 = vsel %vm130, %v136, %v142
  %v149 = vsub.f32 0.0, %v71
  %v150 = vsub.f32 0.0, %v72
  %v151 = vsub.f32 0.0, %v73
  %v152 = vsub.f32 0.0, %v74
  %v153 = vsub.f32 0.0, %v75
  %v154 = vsub.f32 0.0, %v76
  %v155 = vsub.f32 %v149, %v114
  %v156 = vsub.f32 %v150, %v116
  %v157 = vsub.f32 %v151, %v118
  %v158 = vsub.f32 %v152, %v120
  %v159 = vsub.f32 %v153, %v122
  %v160 = vsub.f32 %v154, %v124
  %v161 = vsel %vm125, %v155, %v131
  %v162 = vsel %vm126, %v156, %v132
  %v163 = vsel %vm127, %v157, %v133
  %v164 = vsel %vm128, %v158, %v134
  %v165 = vsel %vm129, %v159, %v135
  %v166 = vsel %vm130, %v160, %v136
  %v167 = vmul.f32 %v143, 1.442695
  %v168 = vpow.pop %v167
  %v169 = vmul.f32 %v144, 1.442695
  %v170 = vpow.pop %v169
  %v171 = vmul.f32 %v145, 1.442695
  %v172 = vpow.pop %v171
  %v173 = vmul.f32 %v146, 1.442695
  %v174 = vpow.pop %v173
  %v175 = vmul.f32 %v147, 1.442695
  %v176 = vpow.pop %v175
  %v177 = vmul.f32 %v148, 1.442695
  %v178 = vpow.pop %v177
  %v179 = vmax.f32 %v143, -100.0
  %v180 = vmax.f32 %v144, -100.0
  %v181 = vmax.f32 %v145, -100.0
  %v182 = vmax.f32 %v146, -100.0
  %v183 = vmax.f32 %v147, -100.0
  %v184 = vmax.f32 %v148, -100.0
  %v185 = vmax.f32 %v161, -100.0
  %v186 = vmax.f32 %v162, -100.0
  %v187 = vmax.f32 %v163, -100.0
  %v188 = vmax.f32 %v164, -100.0
  %v189 = vmax.f32 %v165, -100.0
  %v190 = vmax.f32 %v166, -100.0
  %v191 = vsub.f32 %v179, %v185
  %v192 = vsub.f32 %v180, %v186
  %v193 = vsub.f32 %v181, %v187
  %v194 = vsub.f32 %v182, %v188
  %v195 = vsub.f32 %v183, %v189
  %v196 = vsub.f32 %v184, %v190
  %v197 = vmul.f32 %v77, %v191
  %v198 = vmul.f32 %v78, %v192
  %v199 = vmul.f32 %v79, %v193
  %v200 = vmul.f32 %v80, %v194
  %v201 = vmul.f32 %v81, %v195
  %v202 = vmul.f32 %v82, %v196
  %v203 = vadd.f32 %v185, %v197
  %v204 = vadd.f32 %v186, %v198
  %v205 = vadd.f32 %v187, %v199
  %v206 = vadd.f32 %v188, %v200
  %v207 = vadd.f32 %v189, %v201
  %v208 = vadd.f32 %v190, %v202
  %v209 = vsub.f32 0.0, %v203
  %v210 = vsub.f32 0.0, %v204
  %v211 = vsub.f32 0.0, %v205
  %v212 = vsub.f32 0.0, %v206
  %v213 = vsub.f32 0.0, %v207
  %v214 = vsub.f32 0.0, %v208
  %v215 = vld [vmem:[#allocation2] sm:$0xff]
  %v216 = vld [vmem:[#allocation2 + $0x8] sm:$0xff]
  %v217 = vld [vmem:[#allocation2 + $0x10] sm:$0x3f]
  %v218 = vmul.f32 %v168, %v77
  %v219 = vmul.f32 %v170, %v78
  %v220 = vmul.f32 %v172, %v79
  %v221 = vmul.f32 %v174, %v80
  %v222 = vmul.f32 %v176, %v81
  %v223 = vmul.f32 %v178, %v82
  %v224 = vadd.f32 %v218, %v219
  %v225 = vadd.f32 %v220, %v221
  %v226 = vadd.f32 %v222, %v223
  %v227 = vadd.f32 %v215, %v224
  %v228 = vadd.f32 %v216, %v225
  %v229 = vadd.f32 %v217, %v226
  %230 = vst [vmem:[#allocation2] sm:$0xff] %v227
  %231 = vst [vmem:[#allocation2 + $0x8] sm:$0xff] %v228
  %232 = vst [vmem:[#allocation2 + $0x10] sm:$0x3f] %v229
  %s233 = scalar_lea.vmem [#allocation2], 24
  %v234 = vld [vmem:[%s233] sm:$0xff]
  %v235 = vld [vmem:[%s233 + $0x8] sm:$0xff]
  %v236 = vld [vmem:[%s233 + $0x10] sm:$0x3f]
  %v237 = vadd.f32 %v168, %v170
  %v238 = vadd.f32 %v172, %v174
  %v239 = vadd.f32 %v176, %v178
  %v240 = vadd.f32 %v234, %v237
  %v241 = vadd.f32 %v235, %v238
  %v242 = vadd.f32 %v236, %v239
  %243 = vst [vmem:[%s233] sm:$0xff] %v240
  %244 = vst [vmem:[%s233 + $0x8] sm:$0xff] %v241
  %245 = vst [vmem:[%s233 + $0x10] sm:$0x3f] %v242
  %s246 = scalar_lea.vmem [#allocation2], 48
  %v247 = vld [vmem:[%s246] sm:$0xff]
  %v248 = vld [vmem:[%s246 + $0x8] sm:$0xff]
  %v249 = vld [vmem:[%s246 + $0x10] sm:$0x3f]
  %v250 = vadd.f32 %v77, %v78
  %v251 = vadd.f32 %v79, %v80
  %v252 = vadd.f32 %v81, %v82
  %v253 = vadd.f32 %v247, %v250
  %v254 = vadd.f32 %v248, %v251
  %v255 = vadd.f32 %v249, %v252
  %256 = vst [vmem:[%s246] sm:$0xff] %v253
  %257 = vst [vmem:[%s246 + $0x8] sm:$0xff] %v254
  %258 = vst [vmem:[%s246 + $0x10] sm:$0x3f] %v255
  %s259 = scalar_lea.vmem [#allocation2], 72
  %v260 = vld [vmem:[%s259] sm:$0xff]
  %v261 = vld [vmem:[%s259 + $0x8] sm:$0xff]
  %v262 = vld [vmem:[%s259 + $0x10] sm:$0x3f]
  %v263 = vadd.f32 %v209, %v210
  %v264 = vadd.f32 %v211, %v212
  %v265 = vadd.f32 %v213, %v214
  %v266 = vadd.f32 %v260, %v263
  %v267 = vadd.f32 %v261, %v264
  %v268 = vadd.f32 %v262, %v265
  %269 = vst [vmem:[%s259] sm:$0xff] %v266
  %270 = vst [vmem:[%s259 + $0x8] sm:$0xff] %v267
  %271 = vst [vmem:[%s259 + $0x10] sm:$0x3f] %v268
  // Predicated region
  $region14: #{_lambda_.1} parent=0 // pred_check
    %p272 = pneg %p55
  $region15: #{_lambda_.1} parent=0 // pred_check_branch
    %274 = sbr.rel (%p272) target = $region17
  $region16: #{_lambda_.1} parent=0 // pred_region
    %v275 = vld [vmem:[#allocation2] sm:$0xff]
    %v276 = vld [vmem:[#allocation2 + $0x8] sm:$0xff]
    %v277 = vld [vmem:[#allocation2 + $0x10] sm:$0x3f]
    %v278 = vld [vmem:[#allocation2 + $0x18] sm:$0xff]
    %v279 = vld [vmem:[#allocation2 + $0x20] sm:$0xff]
    %v280 = vld [vmem:[#allocation2 + $0x28] sm:$0x3f]
    %v281 = vld [vmem:[#allocation2 + $0x30] sm:$0xff]
    %v282 = vld [vmem:[#allocation2 + $0x38] sm:$0xff]
    %v283 = vld [vmem:[#allocation2 + $0x40] sm:$0x3f]
    %v284 = vld [vmem:[#allocation2 + $0x48] sm:$0xff]
    %v285 = vld [vmem:[#allocation2 + $0x50] sm:$0xff]
    %v286 = vld [vmem:[#allocation2 + $0x58] sm:$0x3f]
    %287 = vadd.xlane.f32.xlu0 %v275
    %v288 = vpop.xlane.xlu0 %287
    %289 = vadd.xlane.f32.xlu0 %v276
    %v290 = vpop.xlane.xlu0 %289
    %vm291 = vcmask 1045504
    %v292 = vsel %vm291, %v277, 0.0
    %293 = vadd.xlane.f32.xlu0 %v292
    %v294 = vpop.xlane.xlu0 %293
    %295 = vadd.xlane.f32.xlu0 %v278
    %v296 = vpop.xlane.xlu0 %295
    %297 = vadd.xlane.f32.xlu0 %v279
    %v298 = vpop.xlane.xlu0 %297
    %v299 = vsel %vm291, %v280, 0.0
    %300 = vadd.xlane.f32.xlu0 %v299
    %v301 = vpop.xlane.xlu0 %300
    %302 = vadd.xlane.f32.xlu0 %v281
    %v303 = vpop.xlane.xlu0 %302
    %304 = vadd.xlane.f32.xlu0 %v282
    %v305 = vpop.xlane.xlu0 %304
    %v306 = vsel %vm291, %v283, 0.0
    %307 = vadd.xlane.f32.xlu0 %v306
    %v308 = vpop.xlane.xlu0 %307
    %309 = vadd.xlane.f32.xlu0 %v284
    %v310 = vpop.xlane.xlu0 %309
    %311 = vadd.xlane.f32.xlu0 %v285
    %v312 = vpop.xlane.xlu0 %311
    %v313 = vsel %vm291, %v286, 0.0
    %314 = vadd.xlane.f32.xlu0 %v313
    %v315 = vpop.xlane.xlu0 %314
    %v328 = vlaneseq
    %v329 = vand.u32 %v328, 127
    %v330 = vlaneseq
    %v331 = vshrl.u32 %v330, 7
    %v332 = vsub.s32 %v329, %v331
    %v333 = vrot.slane %v288, %v332
    %v334 = vadd.s32 %v329, 4294967288
    %v335 = vlaneseq
    %v336 = vshrl.u32 %v335, 7
    %v337 = vsub.s32 %v334, %v336
    %v338 = vrot.slane %v290, %v337
    %vm339 = vcmask 130112
    %v340 = vsel %vm339, %v338, %v333
    %v341 = vadd.s32 %v329, 4294967280
    %v342 = vlaneseq
    %v343 = vshrl.u32 %v342, 7
    %v344 = vsub.s32 %v341, %v343
    %v345 = vrot.slane %v294, %v344
    %vm346 = vcmask 195712
    %v347 = vsel %vm346, %v345, %v340
    %v348 = vlaneseq
    %v349 = vshrl.u32 %v348, 7
    %v350 = vsub.s32 %v329, %v349
    %v351 = vrot.slane %v296, %v350
    %v352 = vlaneseq
    %v353 = vshrl.u32 %v352, 7
    %v354 = vsub.s32 %v334, %v353
    %v355 = vrot.slane %v298, %v354
    %v356 = vsel %vm339, %v355, %v351
    %v357 = vlaneseq
    %v358 = vshrl.u32 %v357, 7
    %v359 = vsub.s32 %v341, %v358
    %v360 = vrot.slane %v301, %v359
    %v361 = vsel %vm346, %v360, %v356
    %v362 = vlaneseq
    %v363 = vshrl.u32 %v362, 7
    %v364 = vsub.s32 %v329, %v363
    %v365 = vrot.slane %v303, %v364
    %v366 = vlaneseq
    %v367 = vshrl.u32 %v366, 7
    %v368 = vsub.s32 %v334, %v367
    %v369 = vrot.slane %v305, %v368
    %v370 = vsel %vm339, %v369, %v365
    %v371 = vlaneseq
    %v372 = vshrl.u32 %v371, 7
    %v373 = vsub.s32 %v341, %v372
    %v374 = vrot.slane %v308, %v373
    %v375 = vsel %vm346, %v374, %v370
    %v376 = vlaneseq
    %v377 = vshrl.u32 %v376, 7
    %v378 = vsub.s32 %v329, %v377
    %v379 = vrot.slane %v310, %v378
    %v380 = vlaneseq
    %v381 = vshrl.u32 %v380, 7
    %v382 = vsub.s32 %v334, %v381
    %v383 = vrot.slane %v312, %v382
    %v384 = vsel %vm339, %v383, %v379
    %v385 = vlaneseq
    %v386 = vshrl.u32 %v385, 7
    %v387 = vsub.s32 %v341, %v386
    %v388 = vrot.slane %v315, %v387
    %v389 = vsel %vm346, %v388, %v384
    %vm390 = vcmask 1041409
    %v391 = vsel %vm390, %v361, %v347
    %vm392 = vcmask 1042434
    %v393 = vsel %vm392, %v375, %v391
    %vm394 = vcmask 1043459
    %v395 = vsel %vm394, %v389, %v393
    %vm397 = vcmask 175104
    %398 = vst.msk [vmem:[%s2] sm:$0xf] %vm397, %v395
  $region17: #{_lambda_.1} parent=0 // pred_fallthru
    _
  // Predicated region
  $region18: #{_lambda_.1} parent=0 // pred_check
    _
  $region19: #{_lambda_.1} parent=0 // pred_check_branch
    %400 = sbr.rel (0) target = $region21
  $region20: #{_lambda_.1} parent=0 // pred_region
    _
  $region21: #{_lambda_.1} parent=0 // pred_fallthru
    _
  // Predicated region
  $region22: #{_lambda_.1} parent=0 // pred_check
    _
  $region23: #{_lambda_.1} parent=0 // pred_check_branch
    %402 = sbr.rel (0) target = $region25
  $region24: #{_lambda_.1} parent=0 // pred_region
    _
  $region25: #{_lambda_.1} parent=0 // pred_fallthru
    _

</llo_original>
